<compile_context>
chip_gen: v7x
topology: tpu7x:2x2x1
jax: 0.10.0
libtpu: 0.0.40
codegen_flags: <defaults>
</compile_context>

<pallas_src>
import functools

import jax
import jax.numpy as jnp
from jax.experimental import pallas as pl
from jax.experimental.pallas import tpu as pltpu


def _graphconv_kernel(add_self, fused_self, att, use_bias, normalize,
                      assoc_right, cache_xw, cache_att, dout_main, *refs):
    # ---- unpack refs (inputs, outputs, scratch) per static flag config ----
    idx = 0
    x_ref = refs[idx]; idx += 1
    adj_ref = refs[idx]; idx += 1
    w_ref = refs[idx]; idx += 1
    sw_ref = None
    if add_self and not fused_self:
        sw_ref = refs[idx]; idx += 1
    aw_ref = None
    if att:
        aw_ref = refs[idx]; idx += 1
    b_ref = None
    if use_bias:
        b_ref = refs[idx]; idx += 1
    y_ref = refs[idx]; idx += 1
    adj_out_ref = None
    if att:
        adj_out_ref = refs[idx]; idx += 1
    xw_ref = None
    if cache_xw:
        xw_ref = refs[idx]; idx += 1
    xatt_ref = None
    if cache_att:
        xatt_ref = refs[idx]; idx += 1

    bb, n, din = x_ref.shape            # packed batch, all (padded) nodes, Din
    tn = adj_ref.shape[1]               # node-row tile handled by this step
    full_rows = (tn == n)
    j = pl.program_id(1)
    row0 = pl.multiple_of(j * tn, tn)

    def apply_w(v, wm):
        # (bb, r, d_in) @ (d_in, d_out) -> (bb, r, d_out) via one 2-D MXU dot.
        b, r, d_in = v.shape
        out = jnp.dot(v.reshape(b * r, d_in), wm,
                      preferred_element_type=jnp.float32)
        return out.reshape(b, r, wm.shape[1])

    def bmm(a, b):
        # (bb, m, k) @ (bb, k, e) -> (bb, m, e), f32 accumulation on the MXU.
        return jax.lax.dot_general(
            a, b, dimension_numbers=(((2,), (1,)), ((0,), (0,))),
            preferred_element_type=jnp.float32)

    x_full = x_ref[...]                 # (bb, n, din) -- native dtype to MXU
    adj = adj_ref[...]                  # (bb, tn, n)

    # ---- attention re-weighting of the adjacency ----
    if att:
        if cache_att:
            @pl.when(j == 0)
            def _():
                xatt_ref[...] = apply_w(x_full, aw_ref[...])
            x_att_full = xatt_ref[...]
            x_att_rows = (x_att_full if full_rows
                          else xatt_ref[:, pl.ds(row0, tn), :])
        else:
            x_att_full = apply_w(x_full, aw_ref[...])
            x_att_rows = x_att_full      # no caching => single node tile
        # Contract last dims of both operands: no transpose materialized.
        att_m = jax.lax.dot_general(
            x_att_rows, x_att_full,
            dimension_numbers=(((2,), (2,)), ((0,), (0,))),
            preferred_element_type=jnp.float32)             # (bb, tn, n)
        adj = adj * att_m                                    # promotes to f32
        adj_out_ref[...] = adj.astype(adj_out_ref.dtype)

    # ---- aggregation y = adj @ x @ W (+ x @ sW) ----
    w = w_ref[...]
    if assoc_right:
        # y = adj @ (x @ W); xW computed once per batch block, cached in VMEM.
        if cache_xw:
            @pl.when(j == 0)
            def _():
                xw_ref[...] = apply_w(x_full, w)
            if fused_self:
                xw_main = xw_ref[:, :, pl.ds(0, dout_main)]
                self_term = xw_ref[:, pl.ds(row0, tn),
                                   pl.ds(dout_main, dout_main)]
            else:
                xw_main = xw_ref[...]
                self_term = None
        else:
            xw_all = apply_w(x_full, w)
            if fused_self:
                xw_main = xw_all[..., :dout_main]
                self_term = xw_all[..., dout_main:]          # full rows here
            else:
                xw_main = xw_all
                self_term = None
        y = bmm(adj, xw_main)                                # (bb, tn, dout)
        if self_term is not None:
            y = y + self_term
    else:
        # y = (adj @ x) @ W
        ax = bmm(adj, x_full)                                # (bb, tn, din)
        y = apply_w(ax, w)                                   # (bb, tn, dout)
        if add_self:
            x_rows = x_full if full_rows else x_ref[:, pl.ds(row0, tn), :]
            y = y + apply_w(x_rows, sw_ref[...])

    if use_bias:
        y = y + b_ref[...].astype(jnp.float32)               # (1, dout) bcast

    if normalize:
        # F.normalize(y, p=2, dim=2): y / max(||y||_2, 1e-12)
        #   == y * rsqrt(max(sum(y^2), 1e-24))  (rsqrt on EUP, mult on VPU)
        # Padded output columns are exactly zero, so the norm is unaffected.
        sumsq = jnp.sum(y * y, axis=-1, keepdims=True)
        y = y * jax.lax.rsqrt(jnp.maximum(sumsq, 1e-24))

    y_ref[...] = y.astype(y_ref.dtype)


def _tpu_profile():
    """Return (scoped VMEM limit to request, chip has 2 TensorCores)."""
    kind = ""
    try:
        kind = jax.devices()[0].device_kind.lower()
    except Exception:
        pass
    two_cores = "v7" in kind
    vmem_cap = None
    try:
        vmem_cap = int(pltpu.get_tpu_info().vmem_capacity_bytes)
    except Exception:
        vmem_cap = None
    if vmem_cap is None:
        vmem_cap = (64 if two_cores else 128) * 1024 * 1024
    if vmem_cap <= 64 * 1024 * 1024:
        vmem_limit = 36 * 1024 * 1024      # v7x: leave headroom in 64 MiB
    else:
        vmem_limit = 80 * 1024 * 1024      # v5e/v6e: 128 MiB physical
    return vmem_limit, two_cores


def graph_conv(x, adj, weight, bias=None, self_weight=None, att_weight=None,
               normalize_embedding=False):
    """Pallas implementation of GraphConv.forward (dropout=0).

    Returns (y, adj_out), matching the PyTorch module's (y, adj). When
    att_weight is None the adjacency is returned untouched (no HBM copy).
    """
    # TODO(synk): dropout path (p > 0) not implemented; default module config has p=0.0.
    # TODO(synk): optional bf16 adj/x MXU feed (halves the dominant N^2 HBM read
    # on v6e/v7x) is gated on input semantics (binary adjacency) and left off here.
    B, N, Din = x.shape
    Dout = weight.shape[1]
    add_self = self_weight is not None
    att = att_weight is not None
    use_bias = bias is not None

    y_dtype = jnp.result_type(x.dtype, adj.dtype, weight.dtype)
    adj_out_dtype = (jnp.result_type(adj.dtype, x.dtype, att_weight.dtype)
                     if att else adj.dtype)

    # ---- lane-dense output: pad Dout to a multiple of 128 (full-vreg stores).
    lane = 128
    Dout_p = ((Dout + lane - 1) // lane) * lane
    pad_c = Dout_p - Dout
    w_pad = weight if pad_c == 0 else jnp.pad(weight, ((0, 0), (0, pad_c)))
    sw_pad = None
    if add_self:
        sw_pad = (self_weight if pad_c == 0
                  else jnp.pad(self_weight, ((0, 0), (0, pad_c))))
    bias_pad = None
    if use_bias:
        bias_pad = bias if pad_c == 0 else jnp.pad(bias, ((0, pad_c),))

    itx = jnp.dtype(x.dtype).itemsize
    ita = jnp.dtype(adj.dtype).itemsize
    ity = jnp.dtype(y_dtype).itemsize
    itao = jnp.dtype(adj_out_dtype).itemsize
    itw = jnp.dtype(weight.dtype).itemsize

    vmem_limit, two_cores = _tpu_profile()
    budget = vmem_limit // 2            # per-step working set incl. dbl-buffer

    # ---- matmul association (xW cached across node tiles makes adj@(xW)
    # cost ~N^2*Dout per batch block vs ~N^2*Din for (adj@x)@W).
    dout_tot_right = 2 * Dout_p if add_self else Dout_p
    cost_right = N * Din * dout_tot_right + N * N * Dout_p
    cost_left = N * N * Din + N * Din * Dout_p + (N * Din * Dout_p if add_self else 0)
    assoc_right = cost_right <= cost_left
    fused_self = add_self and assoc_right
    dout_tot = dout_tot_right if fused_self else Dout_p

    def step_bytes(bb, tn, n_pad, use_xw_cache, use_att_cache):
        b = 2 * bb * n_pad * Din * itx             # x block (double buffered)
        b += 2 * bb * tn * n_pad * ita             # adj block
        b += 2 * bb * tn * Dout_p * ity            # y block
        if att:
            b += 2 * bb * tn * n_pad * itao        # adj_out block
            b += 2 * Din * Din * itw               # att weight
        if use_xw_cache:
            b += bb * n_pad * dout_tot * 4         # xW cache scratch (f32)
        if use_att_cache:
            b += bb * n_pad * max(Din, lane) * 4   # x@attW cache scratch (f32)
        b += 2 * Din * dout_tot * itw + 2 * Dout_p * 4   # weights / bias
        b += bb * tn * max(n_pad, Dout_p) * 4      # f32 working intermediates
        return b

    # ---- batch packing: largest bb (divisor of B) whose working set fits.
    bb = 1
    for cand in range(B, 0, -1):
        if B % cand == 0 and step_bytes(cand, N, N, False, False) <= budget:
            bb = cand
            break

    # ---- node tiling when even a single graph exceeds the budget.
    tn, N_p = N, N
    if bb == 1 and step_bytes(1, N, N, False, False) > budget:
        for cand in (512, 256, 128, 64, 32, 16, 8):
            n_pad = ((N + cand - 1) // cand) * cand
            if step_bytes(1, cand, n_pad, assoc_right, att) <= budget or cand == 8:
                tn, N_p = cand, n_pad
                break
        # TODO(synk): for huge N*Din a K (adjacency-column) reduction axis would
        # bound VMEM on both dims (needed on v7x for N>=8K, Din>=256).
    nt = N_p // tn

    # ---- v7x has 2 TensorCores: keep >= 2 iterations on a parallel grid axis.
    if two_cores and nt == 1 and B // bb < 2 and B >= 2:
        for cand in range(B // 2, 0, -1):
            if B % cand == 0:
                bb = cand
                break

    cache_xw = assoc_right and nt > 1
    cache_att = att and nt > 1

    # ---- pad N if the node tile does not divide it (zero rows/cols are inert
    # through every op; padded rows are sliced off at the end).
    x_in, adj_in = x, adj
    if N_p != N:
        x_in = jnp.pad(x, ((0, 0), (0, N_p - N), (0, 0)))
        adj_in = jnp.pad(adj, ((0, 0), (0, N_p - N), (0, N_p - N)))

    w_in = jnp.concatenate([w_pad, sw_pad], axis=1) if fused_self else w_pad

    inputs = [x_in, adj_in, w_in]
    in_specs = [
        pl.BlockSpec((bb, N_p, Din), lambda b, j: (b, 0, 0)),
        pl.BlockSpec((bb, tn, N_p), lambda b, j: (b, j, 0)),
        pl.BlockSpec((Din, dout_tot), lambda b, j: (0, 0)),
    ]
    if add_self and not fused_self:
        inputs.append(sw_pad)
        in_specs.append(pl.BlockSpec((Din, Dout_p), lambda b, j: (0, 0)))
    if att:
        inputs.append(att_weight)
        in_specs.append(pl.BlockSpec((Din, Din), lambda b, j: (0, 0)))
    if use_bias:
        inputs.append(bias_pad.reshape(1, Dout_p))
        in_specs.append(pl.BlockSpec((1, Dout_p), lambda b, j: (0, 0)))

    out_shape = [jax.ShapeDtypeStruct((B, N_p, Dout_p), y_dtype)]
    out_specs = [pl.BlockSpec((bb, tn, Dout_p), lambda b, j: (b, j, 0))]
    if att:
        out_shape.append(jax.ShapeDtypeStruct((B, N_p, N_p), adj_out_dtype))
        out_specs.append(pl.BlockSpec((bb, tn, N_p), lambda b, j: (b, j, 0)))

    scratch_shapes = []
    if cache_xw:
        scratch_shapes.append(pltpu.VMEM((bb, N_p, dout_tot), jnp.float32))
    if cache_att:
        scratch_shapes.append(pltpu.VMEM((bb, N_p, Din), jnp.float32))

    # Advisory cost estimate so XLA schedules/overlaps the custom call sanely.
    flops = 2 * B * (N * N * (Dout_p if assoc_right else Din))
    flops += 2 * B * N * Din * dout_tot
    if att:
        flops += 2 * B * (N * Din * Din + N * N * Din) + B * N * N
    transcendentals = B * N if normalize_embedding else 0
    bytes_accessed = (B * N_p * Din * itx + B * N_p * N_p * ita
                      + Din * dout_tot * itw + B * N_p * Dout_p * ity)
    if att:
        bytes_accessed += B * N_p * N_p * itao + Din * Din * itw

    kernel = functools.partial(
        _graphconv_kernel, add_self, fused_self, att, use_bias,
        normalize_embedding, assoc_right, cache_xw, cache_att, Dout_p)

    dim_sem = ("parallel",
               "arbitrary" if (cache_xw or cache_att) else "parallel")

    # TODO(synk): if profiling still shows exposed DMA on the adj stream,
    # bump its BlockSpec to pipeline_mode=pl.Buffered(3) (VMEM headroom permitting).
    outs = pl.pallas_call(
        kernel,
        out_shape=tuple(out_shape),
        grid=(B // bb, nt),
        in_specs=in_specs,
        out_specs=tuple(out_specs),
        scratch_shapes=tuple(scratch_shapes),
        compiler_params=pltpu.CompilerParams(
            dimension_semantics=dim_sem,
            vmem_limit_bytes=vmem_limit),
        cost_estimate=pl.CostEstimate(
            flops=int(flops),
            transcendentals=int(transcendentals),
            bytes_accessed=int(bytes_accessed)),
    )(*inputs)

    if att:
        y_out, adj_out = outs
        y_out = y_out[:, :N, :Dout]
        if N_p != N:
            adj_out = adj_out[:, :N, :N]
        return y_out, adj_out
    (y_out,) = outs
    return y_out[:, :N, :Dout], adj   # adj untouched: no kernel round-trip


def _reference(x, adj, weight, bias=None, self_weight=None, att_weight=None,
               normalize_embedding=False):
    """Plain-JAX reference mirroring the PyTorch forward."""
    if att_weight is not None:
        x_att = jnp.matmul(x, att_weight)
        att = jnp.matmul(x_att, jnp.swapaxes(x_att, 1, 2))
        adj = adj * att
    y = jnp.matmul(adj, x)
    y = jnp.matmul(y, weight)
    if self_weight is not None:
        y = y + jnp.matmul(x, self_weight)
    if bias is not None:
        y = y + bias
    if normalize_embedding:
        norm = jnp.sqrt(jnp.sum(y * y, axis=2, keepdims=True))
        y = y / jnp.maximum(norm, 1e-12)
    return y, adj


if __name__ == "__main__":
    B, N, Din, Dout = 2, 16, 32, 32
    key = jax.random.PRNGKey(0)
    kx, ka, kw, kb, ksw, kaw = jax.random.split(key, 6)

    x = jax.random.normal(kx, (B, N, Din), dtype=jnp.float32)
    adj = jax.random.uniform(ka, (B, N, N), dtype=jnp.float32)

    # Deterministic parameter init (the module's __init__ only declares shapes).
    weight = jax.random.normal(kw, (Din, Dout), dtype=jnp.float32) * 0.1
    bias = jax.random.normal(kb, (Dout,), dtype=jnp.float32) * 0.1
    self_weight = jax.random.normal(ksw, (Din, Dout), dtype=jnp.float32) * 0.1
    att_weight = jax.random.normal(kaw, (Din, Din), dtype=jnp.float32) * 0.1

    # Default module config: att=False, add_self=False, normalize=False, bias=True.
    y, adj_out = graph_conv(x, adj, weight, bias=bias)
    jax.block_until_ready((y, adj_out))
    y_ref, adj_ref = _reference(x, adj, weight, bias=bias)
    assert jnp.allclose(y, y_ref, atol=1e-4, rtol=1e-4)
    assert jnp.allclose(adj_out, adj_ref, atol=1e-4, rtol=1e-4)

    # Full-featured config: att + add_self + normalize_embedding.
    y2, adj2 = graph_conv(x, adj, weight, bias=bias, self_weight=self_weight,
                          att_weight=att_weight, normalize_embedding=True)
    jax.block_until_ready((y2, adj2))
    y2_ref, adj2_ref = _reference(x, adj, weight, bias=bias,
                                  self_weight=self_weight,
                                  att_weight=att_weight,
                                  normalize_embedding=True)
    assert jnp.allclose(y2, y2_ref, atol=1e-4, rtol=1e-4)
    assert jnp.allclose(adj2, adj2_ref, atol=1e-4, rtol=1e-4)

    print("KERNEL_OK")
</pallas_src>

<mosaic_0001>
module attributes {stable_mosaic.version = 11 : i64} {
  func.func @_graphconv_kernel(%arg0: i32, %arg1: i32, %arg2: memref<2x16x32xf32, #tpu.memory_space<vmem>>, %arg3: memref<2x16x16xf32, #tpu.memory_space<vmem>>, %arg4: memref<32x128xf32, #tpu.memory_space<vmem>>, %arg5: memref<1x128xf32, #tpu.memory_space<vmem>>, %arg6: memref<2x16x128xf32, #tpu.memory_space<vmem>>) attributes {dimension_semantics = [#tpu.dimension_semantics<parallel>, #tpu.dimension_semantics<parallel>], iteration_bounds = array<i64: 1, 1>, scalar_prefetch = 0 : i64, scratch_operands = 0 : i64, tpu.core_type = #tpu.core_type<tc>, window_params = [{transform_indices = @transform_0, window_bounds = array<i64: 2, 16, 32>}, {transform_indices = @transform_1, window_bounds = array<i64: 2, 16, 16>}, {pipeline_mode = #tpu.pipeline_mode<synchronous>, transform_indices = @transform_2, window_bounds = array<i64: 32, 128>}, {pipeline_mode = #tpu.pipeline_mode<synchronous>, transform_indices = @transform_3, window_bounds = array<i64: 1, 128>}, {transform_indices = @transform_4, window_bounds = array<i64: 2, 16, 128>}]} {
    %c0 = arith.constant 0 : index
    %c0_0 = arith.constant 0 : index
    %c0_1 = arith.constant 0 : index
    %0 = vector.load %arg2[%c0, %c0_0, %c0_1] : memref<2x16x32xf32, #tpu.memory_space<vmem>>, vector<2x16x32xf32>
    %c0_2 = arith.constant 0 : index
    %c0_3 = arith.constant 0 : index
    %c0_4 = arith.constant 0 : index
    %1 = vector.load %arg3[%c0_2, %c0_3, %c0_4] : memref<2x16x16xf32, #tpu.memory_space<vmem>>, vector<2x16x16xf32>
    %c0_5 = arith.constant 0 : index
    %c0_6 = arith.constant 0 : index
    %2 = vector.load %arg4[%c0_5, %c0_6] : memref<32x128xf32, #tpu.memory_space<vmem>>, vector<32x128xf32>
    %cst = arith.constant dense<0.000000e+00> : vector<2x16x32xf32>
    %3 = tpu.matmul %1, %0, %cst {dimension_numbers = #tpu.dot_dimension_numbers<[2], [1], [1], [2], [0, 0, 0, 1, 1, 2], [0], [0]>} : vector<2x16x16xf32>, vector<2x16x32xf32>, vector<2x16x32xf32> -> vector<2x16x32xf32>
    %4 = vector.shape_cast %3 : vector<2x16x32xf32> to vector<32x32xf32>
    %cst_7 = arith.constant dense<0.000000e+00> : vector<32x128xf32>
    %5 = tpu.matmul %4, %2, %cst_7 {dimension_numbers = #tpu.dot_dimension_numbers<[1], [0], [0], [1], [0, 0, 1, 1], [], []>} : vector<32x32xf32>, vector<32x128xf32>, vector<32x128xf32> -> vector<32x128xf32>
    %6 = vector.shape_cast %5 : vector<32x128xf32> to vector<2x16x128xf32>
    %c0_8 = arith.constant 0 : index
    %c0_9 = arith.constant 0 : index
    %7 = vector.load %arg5[%c0_8, %c0_9] : memref<1x128xf32, #tpu.memory_space<vmem>>, vector<1x128xf32>
    %8 = vector.shape_cast %7 : vector<1x128xf32> to vector<1x1x128xf32>
    %9 = vector.broadcast %8 : vector<1x1x128xf32> to vector<2x16x128xf32>
    %10 = arith.addf %6, %9 : vector<2x16x128xf32>
    %c0_10 = arith.constant 0 : index
    %c0_11 = arith.constant 0 : index
    %c0_12 = arith.constant 0 : index
    %11 = vector.load %arg6[%c0_10, %c0_11, %c0_12] : memref<2x16x128xf32, #tpu.memory_space<vmem>>, vector<2x16x128xf32>
    tpu.vector_store %arg6[%c0_10, %c0_11, %c0_12], %10 {strides = array<i32>} : memref<2x16x128xf32, #tpu.memory_space<vmem>>, vector<2x16x128xf32>,
    return
  }
  func.func @transform_0(%arg0: i32, %arg1: i32) -> (i32, i32, i32) {
    %c0_i32 = arith.constant 0 : i32
    %c0_i32_0 = arith.constant 0 : i32
    %c0_i32_1 = arith.constant 0 : i32
    return %arg0, %c0_i32, %c0_i32_0 : i32, i32, i32
  }
  func.func @transform_1(%arg0: i32, %arg1: i32) -> (i32, i32, i32) {
    %c0_i32 = arith.constant 0 : i32
    %c0_i32_0 = arith.constant 0 : i32
    return %arg0, %arg1, %c0_i32 : i32, i32, i32
  }
  func.func @transform_2(%arg0: i32, %arg1: i32) -> (i32, i32) {
    %c0_i32 = arith.constant 0 : i32
    %c0_i32_0 = arith.constant 0 : i32
    %c0_i32_1 = arith.constant 0 : i32
    return %c0_i32, %c0_i32_0 : i32, i32
  }
  func.func @transform_3(%arg0: i32, %arg1: i32) -> (i32, i32) {
    %c0_i32 = arith.constant 0 : i32
    %c0_i32_0 = arith.constant 0 : i32
    %c0_i32_1 = arith.constant 0 : i32
    return %c0_i32, %c0_i32_0 : i32, i32
  }
  func.func @transform_4(%arg0: i32, %arg1: i32) -> (i32, i32, i32) {
    %c0_i32 = arith.constant 0 : i32
    %c0_i32_0 = arith.constant 0 : i32
    return %arg0, %arg1, %c0_i32 : i32, i32, i32
  }
}

</mosaic_0001>

<llo_original>
// kernel: tpu_custom_call.1
$region0: #{tpu_custom_call.1}
  #allocation0 [shape = 'u32[]', space=smem, size = 0x4, offset = 0x4, fixed_abs, tag = 'smem constant byte address 0x4 - core index']
  #allocation1 [shape = 'u32[144,128]{1,0:T(1,128)}', space=vmem, size = 0x12000, scoped, tag = 'internal scratch']
  %s0 = inlined_call_operand.hbm [shape: f32[2,16,32], index: 0, kind: input, shape index: {}]
  %s1 = inlined_call_operand.hbm [shape: f32[2,16,16], index: 1, kind: input, shape index: {}]
  %s2 = inlined_call_operand.hbm [shape: f32[32,128], index: 2, kind: input, shape index: {}]
  %s3 = inlined_call_operand.hbm [shape: f32[1,128], index: 3, kind: input, shape index: {}]
  %s4 = inlined_call_operand.hbm [shape: f32[2,16,128], index: 4, kind: output, shape index: {}]
  %s5 = sld [smem:[#allocation0]]
  $region42: #{tpu_custom_call.1} parent=0
    _
  %s7 = ssub.s32 1, %s5
  %s8 = scalar_select 0, %s7, %s5
  $region1: #{tpu_custom_call.1} parent=0
    #allocation2 [shape = 'u8[16384]{0}', space=vmem, size = 0x4000, scoped, tag = 'input window, operand 0, single buffered']
    #allocation3 [shape = 's32[1]{0}', space=sflag, size = 0x4, scoped, tag = 'scoped memory for tpu_custom_call.1']
    #allocation4 [shape = 's32[1]{0}', space=sflag, size = 0x4, scoped, tag = 'scoped memory for tpu_custom_call.1']
    #allocation5 [shape = 'u8[16384]{0}', space=vmem, size = 0x4000, scoped, tag = 'input window, operand 1, single buffered']
    #allocation6 [shape = 's32[1]{0}', space=sflag, size = 0x4, scoped, tag = 'scoped memory for tpu_custom_call.1']
    #allocation7 [shape = 'u8[16384]{0}', space=vmem, size = 0x4000, scoped, tag = 'input window, operand 2, single buffered']
    #allocation8 [shape = 'u8[512]{0}', space=vmem, size = 0x400, scoped, tag = 'input window, operand 3, single buffered']
    #allocation9 [shape = 's32[1]{0}', space=sflag, size = 0x4, scoped, tag = 'scoped memory for tpu_custom_call.1']
    #allocation10 [shape = 'u8[16384]{0}', space=vmem, size = 0x4000, scoped, tag = 'output window, operand 0, single buffered']
    %9 = vsyncpa [#allocation3], 0
    %10 = vsyncpa [#allocation6], 0
    %11 = vsyncpa [#allocation9], 0
    %12 = vsyncpa [#allocation4], 0
    // Predicated region
    $region2: #{tpu_custom_call.1} parent=1 // pred_check
      _
    $region3: #{tpu_custom_call.1} parent=1 // pred_check_branch
      %14 = sbr.rel (0) target = $region5
    $region4: #{tpu_custom_call.1} parent=1 // pred_region
      %s16 = ssub.s32 512, 512
      %17 = vsyncadd [#allocation3], %s16
      %s18 = sshll.u32 [#allocation2], 4
      %s19 = int_to_ptr.vmem [resolvable:$true] %s18
      %24 = dma.hbm_to_vmem [thread:$0]  %s0, 512, %s19, [#allocation3], 128, 128, 8
    $region5: #{tpu_custom_call.1} parent=1 // pred_fallthru
      _
    // Predicated region
    $region6: #{tpu_custom_call.1} parent=1 // pred_check
      _
    $region7: #{tpu_custom_call.1} parent=1 // pred_check_branch
      %26 = sbr.rel (0) target = $region9
    $region8: #{tpu_custom_call.1} parent=1 // pred_region
      %s28 = ssub.s32 512, 512
      %29 = vsyncadd [#allocation6], %s28
      %s30 = sshll.u32 [#allocation5], 4
      %s31 = int_to_ptr.vmem [resolvable:$true] %s30
      %36 = dma.hbm_to_vmem [thread:$0]  %s1, 512, %s31, [#allocation6], 128, 128, 8
    $region9: #{tpu_custom_call.1} parent=1 // pred_fallthru
      _
    // Predicated region
    $region10: #{tpu_custom_call.1} parent=1 // pred_check
      _
    $region11: #{tpu_custom_call.1} parent=1 // pred_check_branch
      %38 = sbr.rel (0) target = $region13
    $region12: #{tpu_custom_call.1} parent=1 // pred_region
      %s40 = ssub.s32 512, 512
      %41 = vsyncadd [#allocation6], %s40
      %s42 = sshll.u32 [#allocation7], 4
      %s43 = int_to_ptr.vmem [resolvable:$true] %s42
      %48 = dma.hbm_to_vmem [thread:$0]  %s2, 512, %s43, [#allocation6], 128, 128, 8
    $region13: #{tpu_custom_call.1} parent=1 // pred_fallthru
      _
    // Predicated region
    $region14: #{tpu_custom_call.1} parent=1 // pred_check
      _
    $region15: #{tpu_custom_call.1} parent=1 // pred_check_branch
      %50 = sbr.rel (0) target = $region17
    $region16: #{tpu_custom_call.1} parent=1 // pred_region
      %s52 = ssub.s32 16, 16
      %53 = vsyncadd [#allocation9], %s52
      %s55 = sshll.u32 [#allocation8], 4
      %s56 = int_to_ptr.vmem [resolvable:$true] %s55
      %58 = dma.hbm_to_vmem [thread:$0]  %s3, 16, %s56, [#allocation9]
    $region17: #{tpu_custom_call.1} parent=1 // pred_fallthru
      _
    // Predicated region
    $region18: #{tpu_custom_call.1} parent=1 // pred_check
      _
    $region19: #{tpu_custom_call.1} parent=1 // pred_check_branch
      %60 = sbr.rel (0) target = $region21
    $region20: #{tpu_custom_call.1} parent=1 // pred_region
      %61 = dma.done [#allocation3], 512
    $region21: #{tpu_custom_call.1} parent=1 // pred_fallthru
      _
    // Predicated region
    $region22: #{tpu_custom_call.1} parent=1 // pred_check
      _
    $region23: #{tpu_custom_call.1} parent=1 // pred_check_branch
      %63 = sbr.rel (0) target = $region25
    $region24: #{tpu_custom_call.1} parent=1 // pred_region
      %64 = dma.done [#allocation6], 512
    $region25: #{tpu_custom_call.1} parent=1 // pred_fallthru
      _
    // Predicated region
    $region26: #{tpu_custom_call.1} parent=1 // pred_check
      _
    $region27: #{tpu_custom_call.1} parent=1 // pred_check_branch
      %66 = sbr.rel (0) target = $region29
    $region28: #{tpu_custom_call.1} parent=1 // pred_region
      %67 = dma.done [#allocation6], 512
    $region29: #{tpu_custom_call.1} parent=1 // pred_fallthru
      _
    // Predicated region
    $region30: #{tpu_custom_call.1} parent=1 // pred_check
      _
    $region31: #{tpu_custom_call.1} parent=1 // pred_check_branch
      %69 = sbr.rel (0) target = $region33
    $region32: #{tpu_custom_call.1} parent=1 // pred_region
      %70 = dma.done [#allocation9], 16
    $region33: #{tpu_custom_call.1} parent=1 // pred_fallthru
      _
    %v71 = vld [vmem:[#allocation2] sm:$0xff]
    %v72 = vld [vmem:[#allocation2 + $0x8] sm:$0xff]
    %v73 = vld [vmem:[#allocation2 + $0x10] sm:$0xff]
    %v74 = vld [vmem:[#allocation2 + $0x18] sm:$0xff]
    %v75 = vld [vmem:[#allocation5] sm:$0xff]
    %v76 = vld [vmem:[#allocation5 + $0x8] sm:$0xff]
    %v77 = vld [vmem:[#allocation5 + $0x10] sm:$0xff]
    %v78 = vld [vmem:[#allocation5 + $0x18] sm:$0xff]
    %v79 = vld [vmem:[#allocation7] sm:$0xff]
    %v80 = vld [vmem:[#allocation7 + $0x8] sm:$0xff]
    %v81 = vld [vmem:[#allocation7 + $0x10] sm:$0xff]
    %v82 = vld [vmem:[#allocation7 + $0x18] sm:$0xff]
    %vm83 = vcmask 130048
    %v85 = vsel %vm83, %v75, 0
    %v88 = vsel %vm83, %v76, 0
    %90 = vmatprep.subr.mxu0 0.0
    %91 = vmatpush1.msra.mxu0 %v71
    %92 = vmatprep.subr.mxu0 0.0
    %93 = vmatpush1.msra.mxu0 %v72
    %94 = vmatprep.subr.mxu0 0.0
    %95 = vmatpush1.msra.mxu0 0.0
    %96 = vmatprep.subr.mxu0 0.0
    %97 = vmatpush1.msra.mxu0 0.0
    %98 = vmatprep.subr.mxu0 0.0
    %99 = vmatpush1.msra.mxu0 0.0
    %100 = vmatprep.subr.mxu0 0.0
    %101 = vmatpush1.msra.mxu0 0.0
    %102 = vmatprep.subr.mxu0 0.0
    %103 = vmatpush1.msra.mxu0 0.0
    %104 = vmatprep.subr.mxu0 0.0
    %105 = vmatpush1.msra.mxu0 0.0
    %106 = vmatprep.subr.mxu0 0.0
    %107 = vmatpush1.msra.mxu0 0.0
    %108 = vmatprep.subr.mxu0 0.0
    %109 = vmatpush1.msra.mxu0 0.0
    %110 = vmatprep.subr.mxu0 0.0
    %111 = vmatpush1.msra.mxu0 0.0
    %112 = vmatprep.subr.mxu0 0.0
    %113 = vmatpush1.msra.mxu0 0.0
    %114 = vmatprep.subr.mxu0 0.0
    %115 = vmatpush1.msra.mxu0 0.0
    %116 = vmatprep.subr.mxu0 0.0
    %117 = vmatpush1.msra.mxu0 0.0
    %118 = vmatprep.subr.mxu0 0.0
    %119 = vmatpush1.msra.mxu0 0.0
    %120 = vmatprep.subr.mxu0 0.0
    %121 = vmatpush1.msra.mxu0 0.0
    %122 = vmatprep.subr.mxu0 0.0
    %123 = vmatpush1.msra.mxu0 0.0
    %124 = vmatprep.subr.mxu0 0.0
    %125 = vmatpush1.msra.mxu0 0.0
    %126 = vmatprep.subr.mxu0 0.0
    %127 = vmatpush1.msra.mxu0 0.0
    %128 = vmatprep.subr.mxu0 0.0
    %129 = vmatpush1.msra.mxu0 0.0
    %130 = vmatprep.subr.mxu0 0.0
    %131 = vmatpush1.msra.mxu0 0.0
    %132 = vmatprep.subr.mxu0 0.0
    %133 = vmatpush1.msra.mxu0 0.0
    %134 = vmatprep.subr.mxu0 0.0
    %135 = vmatpush1.msra.mxu0 0.0
    %136 = vmatprep.subr.mxu0 0.0
    %137 = vmatpush1.msra.mxu0 0.0
    %138 = vmatprep.subr.mxu0 0.0
    %139 = vmatpush1.msra.mxu0 0.0
    %140 = vmatprep.subr.mxu0 0.0
    %141 = vmatpush1.msra.mxu0 0.0
    %142 = vmatprep.subr.mxu0 0.0
    %143 = vmatpush1.msra.mxu0 0.0
    %144 = vmatprep.subr.mxu0 0.0
    %145 = vmatpush1.msra.mxu0 0.0
    %146 = vmatprep.subr.mxu0 0.0
    %147 = vmatpush1.msra.mxu0 0.0
    %148 = vmatprep.subr.mxu0 0.0
    %149 = vmatpush1.msra.mxu0 0.0
    %150 = vmatprep.subr.mxu0 0.0
    %151 = vmatpush1.msra.mxu0 0.0
    %152 = vmatprep.subr.mxu0 0.0
    %153 = vmatpush1.msra.mxu0 0.0
    %154 = vmatprep.mubr.f32.mxu0 0.0
    %155 = vmatmul.mubr.f32.gmra.mrb[0].mxu0 %v85
    %v156 = vpop.f32.mrb[0].mxu0
    %v157 = vadd.f32 0.0, %v156
    %v158 = vpop.f32.mrb[0].mxu0
    %159 = vmatprep.mubr.f32.mxu0 0.0
    %160 = vmatmul.mubr.f32.gmra.mrb[0].mxu0 %v88
    %v161 = vpop.f32.mrb[0].mxu0
    %v162 = vadd.f32 0.0, %v161
    %v163 = vpop.f32.mrb[0].mxu0
    %164 = vdwg.mxu0
    %v166 = vsel %vm83, %v77, 0
    %v169 = vsel %vm83, %v78, 0
    %171 = vmatprep.subr.mxu0 0.0
    %172 = vmatpush1.msra.mxu0 %v73
    %173 = vmatprep.subr.mxu0 0.0
    %174 = vmatpush1.msra.mxu0 %v74
    %175 = vmatprep.subr.mxu0 0.0
    %176 = vmatpush1.msra.mxu0 0.0
    %177 = vmatprep.subr.mxu0 0.0
    %178 = vmatpush1.msra.mxu0 0.0
    %179 = vmatprep.subr.mxu0 0.0
    %180 = vmatpush1.msra.mxu0 0.0
    %181 = vmatprep.subr.mxu0 0.0
    %182 = vmatpush1.msra.mxu0 0.0
    %183 = vmatprep.subr.mxu0 0.0
    %184 = vmatpush1.msra.mxu0 0.0
    %185 = vmatprep.subr.mxu0 0.0
    %186 = vmatpush1.msra.mxu0 0.0
    %187 = vmatprep.subr.mxu0 0.0
    %188 = vmatpush1.msra.mxu0 0.0
    %189 = vmatprep.subr.mxu0 0.0
    %190 = vmatpush1.msra.mxu0 0.0
    %191 = vmatprep.subr.mxu0 0.0
    %192 = vmatpush1.msra.mxu0 0.0
    %193 = vmatprep.subr.mxu0 0.0
    %194 = vmatpush1.msra.mxu0 0.0
    %195 = vmatprep.subr.mxu0 0.0
    %196 = vmatpush1.msra.mxu0 0.0
    %197 = vmatprep.subr.mxu0 0.0
    %198 = vmatpush1.msra.mxu0 0.0
    %199 = vmatprep.subr.mxu0 0.0
    %200 = vmatpush1.msra.mxu0 0.0
    %201 = vmatprep.subr.mxu0 0.0
    %202 = vmatpush1.msra.mxu0 0.0
    %203 = vmatprep.subr.mxu0 0.0
    %204 = vmatpush1.msra.mxu0 0.0
    %205 = vmatprep.subr.mxu0 0.0
    %206 = vmatpush1.msra.mxu0 0.0
    %207 = vmatprep.subr.mxu0 0.0
    %208 = vmatpush1.msra.mxu0 0.0
    %209 = vmatprep.subr.mxu0 0.0
    %210 = vmatpush1.msra.mxu0 0.0
    %211 = vmatprep.subr.mxu0 0.0
    %212 = vmatpush1.msra.mxu0 0.0
    %213 = vmatprep.subr.mxu0 0.0
    %214 = vmatpush1.msra.mxu0 0.0
    %215 = vmatprep.subr.mxu0 0.0
    %216 = vmatpush1.msra.mxu0 0.0
    %217 = vmatprep.subr.mxu0 0.0
    %218 = vmatpush1.msra.mxu0 0.0
    %219 = vmatprep.subr.mxu0 0.0
    %220 = vmatpush1.msra.mxu0 0.0
    %221 = vmatprep.subr.mxu0 0.0
    %222 = vmatpush1.msra.mxu0 0.0
    %223 = vmatprep.subr.mxu0 0.0
    %224 = vmatpush1.msra.mxu0 0.0
    %225 = vmatprep.subr.mxu0 0.0
    %226 = vmatpush1.msra.mxu0 0.0
    %227 = vmatprep.subr.mxu0 0.0
    %228 = vmatpush1.msra.mxu0 0.0
    %229 = vmatprep.subr.mxu0 0.0
    %230 = vmatpush1.msra.mxu0 0.0
    %231 = vmatprep.subr.mxu0 0.0
    %232 = vmatpush1.msra.mxu0 0.0
    %233 = vmatprep.subr.mxu0 0.0
    %234 = vmatpush1.msra.mxu0 0.0
    %235 = vmatprep.mubr.f32.mxu0 0.0
    %236 = vmatmul.mubr.f32.gmra.mrb[0].mxu0 %v166
    %v237 = vpop.f32.mrb[0].mxu0
    %v238 = vadd.f32 0.0, %v237
    %v239 = vpop.f32.mrb[0].mxu0
    %240 = vmatprep.mubr.f32.mxu0 0.0
    %241 = vmatmul.mubr.f32.gmra.mrb[0].mxu0 %v169
    %v242 = vpop.f32.mrb[0].mxu0
    %v243 = vadd.f32 0.0, %v242
    %v244 = vpop.f32.mrb[0].mxu0
    %245 = vdwg.mxu0
    %vm246 = vcmask 261120
    %v248 = vsel %vm246, %v157, 0
    %v251 = vsel %vm246, %v162, 0
    %v254 = vsel %vm246, %v238, 0
    %v257 = vsel %vm246, %v243, 0
    %259 = vmatprep.subr.mxu0 0.0
    %260 = vmatpush1.msra.mxu0 %v79
    %261 = vmatprep.subr.mxu0 0.0
    %262 = vmatpush1.msra.mxu0 %v80
    %263 = vmatprep.subr.mxu0 0.0
    %264 = vmatpush1.msra.mxu0 %v81
    %265 = vmatprep.subr.mxu0 0.0
    %266 = vmatpush1.msra.mxu0 %v82
    %267 = vmatprep.subr.mxu0 0.0
    %268 = vmatpush1.msra.mxu0 0.0
    %269 = vmatprep.subr.mxu0 0.0
    %270 = vmatpush1.msra.mxu0 0.0
    %271 = vmatprep.subr.mxu0 0.0
    %272 = vmatpush1.msra.mxu0 0.0
    %273 = vmatprep.subr.mxu0 0.0
    %274 = vmatpush1.msra.mxu0 0.0
    %275 = vmatprep.subr.mxu0 0.0
    %276 = vmatpush1.msra.mxu0 0.0
    %277 = vmatprep.subr.mxu0 0.0
    %278 = vmatpush1.msra.mxu0 0.0
    %279 = vmatprep.subr.mxu0 0.0
    %280 = vmatpush1.msra.mxu0 0.0
    %281 = vmatprep.subr.mxu0 0.0
    %282 = vmatpush1.msra.mxu0 0.0
    %283 = vmatprep.subr.mxu0 0.0
    %284 = vmatpush1.msra.mxu0 0.0
    %285 = vmatprep.subr.mxu0 0.0
    %286 = vmatpush1.msra.mxu0 0.0
    %287 = vmatprep.subr.mxu0 0.0
    %288 = vmatpush1.msra.mxu0 0.0
    %289 = vmatprep.subr.mxu0 0.0
    %290 = vmatpush1.msra.mxu0 0.0
    %291 = vmatprep.subr.mxu0 0.0
    %292 = vmatpush1.msra.mxu0 0.0
    %293 = vmatprep.subr.mxu0 0.0
    %294 = vmatpush1.msra.mxu0 0.0
    %295 = vmatprep.subr.mxu0 0.0
    %296 = vmatpush1.msra.mxu0 0.0
    %297 = vmatprep.subr.mxu0 0.0
    %298 = vmatpush1.msra.mxu0 0.0
    %299 = vmatprep.subr.mxu0 0.0
    %300 = vmatpush1.msra.mxu0 0.0
    %301 = vmatprep.subr.mxu0 0.0
    %302 = vmatpush1.msra.mxu0 0.0
    %303 = vmatprep.subr.mxu0 0.0
    %304 = vmatpush1.msra.mxu0 0.0
    %305 = vmatprep.subr.mxu0 0.0
    %306 = vmatpush1.msra.mxu0 0.0
    %307 = vmatprep.subr.mxu0 0.0
    %308 = vmatpush1.msra.mxu0 0.0
    %309 = vmatprep.subr.mxu0 0.0
    %310 = vmatpush1.msra.mxu0 0.0
    %311 = vmatprep.subr.mxu0 0.0
    %312 = vmatpush1.msra.mxu0 0.0
    %313 = vmatprep.subr.mxu0 0.0
    %314 = vmatpush1.msra.mxu0 0.0
    %315 = vmatprep.subr.mxu0 0.0
    %316 = vmatpush1.msra.mxu0 0.0
    %317 = vmatprep.subr.mxu0 0.0
    %318 = vmatpush1.msra.mxu0 0.0
    %319 = vmatprep.subr.mxu0 0.0
    %320 = vmatpush1.msra.mxu0 0.0
    %321 = vmatprep.subr.mxu0 0.0
    %322 = vmatpush1.msra.mxu0 0.0
    %323 = vmatprep.mubr.f32.mxu0 0.0
    %324 = vmatmul.mubr.f32.gmra.mrb[0].mxu0 %v248
    %v325 = vpop.f32.mrb[0].mxu0
    %v326 = vadd.f32 0.0, %v325
    %v327 = vpop.f32.mrb[0].mxu0
    %328 = vmatprep.mubr.f32.mxu0 0.0
    %329 = vmatmul.mubr.f32.gmra.mrb[0].mxu0 %v251
    %v330 = vpop.f32.mrb[0].mxu0
    %v331 = vadd.f32 0.0, %v330
    %v332 = vpop.f32.mrb[0].mxu0
    %333 = vmatprep.mubr.f32.mxu0 0.0
    %334 = vmatmul.mubr.f32.gmra.mrb[0].mxu0 %v254
    %v335 = vpop.f32.mrb[0].mxu0
    %v336 = vadd.f32 0.0, %v335
    %v337 = vpop.f32.mrb[0].mxu0
    %338 = vmatprep.mubr.f32.mxu0 0.0
    %339 = vmatmul.mubr.f32.gmra.mrb[0].mxu0 %v257
    %v340 = vpop.f32.mrb[0].mxu0
    %v341 = vadd.f32 0.0, %v340
    %v342 = vpop.f32.mrb[0].mxu0
    %343 = vdwg.mxu0
    %v344 = vld [vmem:[#allocation8] sm:$0x1]
    %v346 = vlaneseq
    %v347 = vshrl.u32 %v346, 7
    %v348 = vsub.s32 0, %v347
    %v349 = vrot.slane %v344, %v348
    %v351 = vadd.f32 %v326, %v349
    %v352 = vadd.f32 %v331, %v349
    %v353 = vadd.f32 %v336, %v349
    %v354 = vadd.f32 %v341, %v349
    %355 = vst [vmem:[#allocation10] sm:$0xff] %v351
    %356 = vst [vmem:[#allocation10 + $0x8] sm:$0xff] %v352
    %357 = vst [vmem:[#allocation10 + $0x10] sm:$0xff] %v353
    %358 = vst [vmem:[#allocation10 + $0x18] sm:$0xff] %v354
    // Predicated region
    $region34: #{tpu_custom_call.1} parent=1 // pred_check
      _
    $region35: #{tpu_custom_call.1} parent=1 // pred_check_branch
      %360 = sbr.rel (0) target = $region37
    $region36: #{tpu_custom_call.1} parent=1 // pred_region
      %s362 = ssub.s32 512, 512
      %363 = vsyncadd [#allocation4], %s362
      %s364 = sshll.u32 [#allocation10], 4
      %s365 = int_to_ptr.vmem [resolvable:$true] %s364
      %370 = dma.vmem_to_hbm [thread:$0]  %s365, 512, %s4, [#allocation4], 128, 128, 8
    $region37: #{tpu_custom_call.1} parent=1 // pred_fallthru
      _
    // Predicated region
    $region38: #{tpu_custom_call.1} parent=1 // pred_check
      _
    $region39: #{tpu_custom_call.1} parent=1 // pred_check_branch
      %372 = sbr.rel (0) target = $region41
    $region40: #{tpu_custom_call.1} parent=1 // pred_region
      %373 = dma.done [#allocation4], 512
    $region41: #{tpu_custom_call.1} parent=1 // pred_fallthru
      _
    %374 = vsyncpa [#allocation3], 1
    %375 = vsyncpa [#allocation6], 1
    %376 = vsyncpa [#allocation9], 1
    %377 = vsyncpa [#allocation4], 1

</llo_original>
